<compile_context>
chip_gen: v6e
topology: v6e:2x2x1
jax: 0.10.0
libtpu: 0.0.40
codegen_flags: <defaults>
</compile_context>

<pallas_src>
import functools
import math

import jax
import jax.numpy as jnp
from jax.experimental import pallas as pl
from jax.experimental.pallas import tpu as pltpu

_EPS = 1e-6          # torch default eps for PairwiseDistance
_LANE = 128          # TPU lane width


def _tpu_config():
    """Returns (num_splits, vmem_limit_bytes, per-input per-buffer block bytes)."""
    kind = ""
    try:
        kind = jax.devices()[0].device_kind.lower()
    except Exception:
        pass
    if "v7" in kind or "7x" in kind:
        # v7x: 2 TensorCores per chip, only 64 MiB VMEM per core.
        return 2, 48 * 1024 * 1024, 4 * 1024 * 1024
    if "v2" in kind or "v3" in kind:
        # Old parts with small VMEM: stay conservative.
        return 1, 16 * 1024 * 1024, 1 * 1024 * 1024
    # v4 / v5e / v5p / v6e: single Pallas core, 128 MiB physical VMEM.
    return 1, 64 * 1024 * 1024, 4 * 1024 * 1024


def _pd_loss_kernel(*refs, valid_rows, tiles_per_split, group):
    """One (tile_m, d_eff) tile: squared diffs -> per-row L2 -> masked accumulate."""
    if group > 1:
        ones_ref, o_ref, t_ref, out_ref, acc_ref = refs
    else:
        o_ref, t_ref, out_ref, acc_ref = refs

    c = pl.program_id(0)        # TensorCore split ("parallel")
    i = pl.program_id(1)        # batch tile within the split ("arbitrary")

    @pl.when(i == 0)
    def _init():
        acc_ref[...] = jnp.zeros_like(acc_ref)

    tile_m = o_ref.shape[0]
    diff = o_ref[...].astype(jnp.float32) - t_ref[...].astype(jnp.float32) + _EPS
    sq = diff * diff

    if group > 1:
        # Block-diagonal ones matmul recovers per-original-row sums on the MXU.
        row_sq = jnp.dot(sq, ones_ref[...], preferred_element_type=jnp.float32)
    else:
        row_sq = jnp.sum(sq, axis=-1, keepdims=True)        # (tile_m, 1)

    dist = jnp.sqrt(row_sq)                                  # (tile_m, group)

    # Post-reduction row mask (tiny: (tile_m, group), not (tile_m, d_eff)).
    # Covers the ragged boundary tile and any clamped duplicate tile; garbage
    # only ever occupies whole packed rows, so masking whole rows is exact.
    base = (c * tiles_per_split + i) * tile_m
    row_ids = base + jax.lax.broadcasted_iota(jnp.int32, dist.shape, 0)
    dist = jnp.where(row_ids < valid_rows, dist, 0.0)

    # Elementwise vector accumulator: no per-tile cross-lane/sublane reduce.
    acc_ref[...] = acc_ref[...] + dist

    @pl.when(i == pl.num_programs(1) - 1)
    def _finalize():
        out_ref[...] = jnp.full(out_ref.shape, jnp.sum(acc_ref[...]),
                                dtype=out_ref.dtype)


def pd_loss(o: jax.Array, t: jax.Array, *, block_bytes=None, num_splits=None):
    """Pallas TPU implementation of PDLoss(p=2).forward(o, t) -> scalar mean distance."""
    assert o.shape == t.shape and o.ndim == 2, "expected matching (N, D) inputs"
    n, d = o.shape
    assert n > 0 and d > 0

    auto_splits, vmem_limit, auto_block = _tpu_config()
    num_splits = auto_splits if num_splits is None else num_splits
    block_bytes = auto_block if block_bytes is None else block_bytes

    # Lane-dense packing: `group` original rows per vreg row when D is not a
    # multiple of 128.  Only when N % group == 0 (zero-copy contiguous reshape,
    # no input copy); otherwise fall back to group=1 (same HBM traffic).
    group = 1
    if d % _LANE != 0:
        cand = math.lcm(d, _LANE) // d
        if cand > 1 and n % cand == 0 and (d * cand) * cand * 4 <= (1 << 20):
            group = cand
    d_eff = d * group
    m = n // group                      # packed rows; exact because n % group == 0

    if group > 1:
        o = o.reshape(m, d_eff)
        t = t.reshape(m, d_eff)

    # Byte-targeted tile: ~block_bytes of VMEM per input per pipeline buffer
    # (sized against the lane-padded width actually occupied in VMEM).
    itemsize = jnp.dtype(o.dtype).itemsize
    d_vmem = pl.cdiv(d_eff, _LANE) * _LANE
    tile_m = (block_bytes // (d_vmem * itemsize)) // 16 * 16
    per_split = pl.cdiv(pl.cdiv(m, num_splits), 16) * 16
    tile_m = max(16, min(tile_m, per_split))

    num_blocks = pl.cdiv(m, tile_m)
    tiles_per_split = pl.cdiv(num_blocks, num_splits)

    # If the split does not divide the block count, clamp trailing tile indices
    # onto the last real block; their rows are >= m so the in-kernel mask zeros
    # their contribution (no wrapper padding, no extra HBM traffic).
    if num_splits * tiles_per_split > num_blocks:
        def block_index(c, i):
            return (jnp.minimum(c * tiles_per_split + i, num_blocks - 1), 0)
    else:
        def block_index(c, i):
            return (c * tiles_per_split + i, 0)

    data_spec = pl.BlockSpec((tile_m, d_eff), block_index)
    in_specs = [data_spec, data_spec]
    args = [o, t]
    if group > 1:
        # Tiny constant block-diagonal ones matrix; constant index_map => single DMA.
        blk = (jnp.arange(d_eff, dtype=jnp.int32)[:, None] // d
               == jnp.arange(group, dtype=jnp.int32)[None, :])
        in_specs = [pl.BlockSpec((d_eff, group), lambda c, i: (0, 0))] + in_specs
        args = [blk.astype(jnp.float32)] + args

    kernel = functools.partial(
        _pd_loss_kernel, valid_rows=m, tiles_per_split=tiles_per_split, group=group)

    out = pl.pallas_call(
        kernel,
        out_shape=jax.ShapeDtypeStruct((num_splits * 8, _LANE), jnp.float32),
        grid_spec=pltpu.PrefetchScalarGridSpec(
            num_scalar_prefetch=0,
            grid=(num_splits, tiles_per_split),
            in_specs=in_specs,
            out_specs=pl.BlockSpec((8, _LANE), lambda c, i: (c, 0)),
            scratch_shapes=[pltpu.VMEM((tile_m, group), jnp.float32)],
        ),
        compiler_params=pltpu.CompilerParams(
            dimension_semantics=("parallel", "arbitrary"),
            vmem_limit_bytes=vmem_limit,
        ),
        # TODO(synk): pipeline_mode=pl.Buffered(3) on the input specs is a cheap
        # knob if a v7x profile still shows exposed DMA after the tile sizing.
    )(*args)

    # One partial sum per TensorCore split; finish the mean with the true N.
    return jnp.sum(out[::8, 0]) / jnp.float32(n)


def pd_loss_ref(o, t):
    # Pure-JAX reference mirroring torch.nn.PairwiseDistance(p=2, eps=1e-6).mean()
    diff = o.astype(jnp.float32) - t.astype(jnp.float32) + _EPS
    return jnp.mean(jnp.sqrt(jnp.sum(diff * diff, axis=-1)))


if __name__ == "__main__":
    key = jax.random.PRNGKey(0)
    k1, k2, k3, k4, k5, k6 = jax.random.split(key, 6)

    # Small shape consistent with the module: batch=8, hidden=32 (packed path).
    o = jax.random.normal(k1, (8, 32), dtype=jnp.float32)
    t = jax.random.normal(k2, (8, 32), dtype=jnp.float32)
    out = pd_loss(o, t)
    jax.block_until_ready(out)
    assert jnp.allclose(out, pd_loss_ref(o, t), rtol=1e-5, atol=1e-5), (out, pd_loss_ref(o, t))

    # bf16 inputs (halves HBM traffic; math stays f32 in-kernel).
    ob, tb = o.astype(jnp.bfloat16), t.astype(jnp.bfloat16)
    out_b = pd_loss(ob, tb)
    jax.block_until_ready(out_b)
    assert jnp.allclose(out_b, pd_loss_ref(ob, tb), rtol=1e-4, atol=1e-4)

    # Unpacked path (D=96, N not a multiple of the pack factor), ragged tile,
    # no wrapper-side padding or copies.
    o2 = jax.random.normal(k3, (1029, 96), dtype=jnp.float32)
    t2 = jax.random.normal(k4, (1029, 96), dtype=jnp.float32)
    out2 = pd_loss(o2, t2)
    jax.block_until_ready(out2)
    assert jnp.allclose(out2, pd_loss_ref(o2, t2), rtol=1e-5, atol=1e-5)

    # Packed + multi-tile + ragged boundary tile (small tiles forced for test).
    o3 = jax.random.normal(k5, (1000, 32), dtype=jnp.float32)
    t3 = jax.random.normal(k6, (1000, 32), dtype=jnp.float32)
    out3 = pd_loss(o3, t3, block_bytes=32 * 1024)
    jax.block_until_ready(out3)
    assert jnp.allclose(out3, pd_loss_ref(o3, t3), rtol=1e-5, atol=1e-5)

    # 2-way split (the v7x path) with an odd block count: exercises the clamped
    # duplicate-tile masking on any generation.
    out4 = pd_loss(o2, t2, block_bytes=64 * 1024, num_splits=2)
    jax.block_until_ready(out4)
    assert jnp.allclose(out4, pd_loss_ref(o2, t2), rtol=1e-5, atol=1e-5)

    print("KERNEL_OK")
</pallas_src>

<mosaic_0001>
module attributes {stable_mosaic.version = 11 : i64} {
  func.func @_pd_loss_kernel(%arg0: i32, %arg1: i32, %arg2: memref<128x4xf32, #tpu.memory_space<vmem>>, %arg3: memref<16x128xf32, #tpu.memory_space<vmem>>, %arg4: memref<16x128xf32, #tpu.memory_space<vmem>>, %arg5: memref<8x128xf32, #tpu.memory_space<vmem>>, %arg6: memref<16x4xf32, #tpu.memory_space<vmem>>) attributes {dimension_semantics = [#tpu.dimension_semantics<parallel>, #tpu.dimension_semantics<arbitrary>], iteration_bounds = array<i64: 1, 1>, scalar_prefetch = 0 : i64, scratch_operands = 1 : i64, tpu.core_type = #tpu.core_type<tc>, window_params = [{pipeline_mode = #tpu.pipeline_mode<synchronous>, transform_indices = @transform_0, window_bounds = array<i64: 128, 4>}, {transform_indices = @transform_1, window_bounds = array<i64: 16, 128>}, {transform_indices = @transform_2, window_bounds = array<i64: 16, 128>}, {transform_indices = @transform_3, window_bounds = array<i64: 8, 128>}]} {
    %c0_i32 = arith.constant 0 : i32
    %0 = arith.cmpi eq, %arg1, %c0_i32 : i32
    %1 = arith.extui %0 : i1 to i32
    %c0_i32_0 = arith.constant 0 : i32
    %2 = arith.cmpi ne, %1, %c0_i32_0 : i32
    scf.if %2 {
      %cst_14 = arith.constant 0.000000e+00 : f32
      %28 = vector.broadcast %cst_14 : f32 to vector<16x4xf32>
      %c0_15 = arith.constant 0 : index
      %c0_16 = arith.constant 0 : index
      %29 = vector.load %arg6[%c0_15, %c0_16] : memref<16x4xf32, #tpu.memory_space<vmem>>, vector<16x4xf32>
      tpu.vector_store %arg6[%c0_15, %c0_16], %28 {strides = array<i32>} : memref<16x4xf32, #tpu.memory_space<vmem>>, vector<16x4xf32>,
    } else {
    }
    %c0 = arith.constant 0 : index
    %c0_1 = arith.constant 0 : index
    %3 = vector.load %arg3[%c0, %c0_1] : memref<16x128xf32, #tpu.memory_space<vmem>>, vector<16x128xf32>
    %c0_2 = arith.constant 0 : index
    %c0_3 = arith.constant 0 : index
    %4 = vector.load %arg4[%c0_2, %c0_3] : memref<16x128xf32, #tpu.memory_space<vmem>>, vector<16x128xf32>
    %5 = arith.subf %3, %4 : vector<16x128xf32>
    %cst = arith.constant 9.99999997E-7 : f32
    %6 = vector.broadcast %cst : f32 to vector<16x128xf32>
    %7 = arith.addf %5, %6 : vector<16x128xf32>
    %8 = arith.mulf %7, %7 : vector<16x128xf32>
    %c0_4 = arith.constant 0 : index
    %c0_5 = arith.constant 0 : index
    %9 = vector.load %arg2[%c0_4, %c0_5] : memref<128x4xf32, #tpu.memory_space<vmem>>, vector<128x4xf32>
    %cst_6 = arith.constant dense<0.000000e+00> : vector<16x4xf32>
    %10 = tpu.matmul %8, %9, %cst_6 {dimension_numbers = #tpu.dot_dimension_numbers<[1], [0], [0], [1], [0, 0, 1, 1], [], []>} : vector<16x128xf32>, vector<128x4xf32>, vector<16x4xf32> -> vector<16x4xf32>
    %11 = math.sqrt %10 : vector<16x4xf32>
    %c1_i32 = arith.constant 1 : i32
    %12 = arith.muli %arg0, %c1_i32 : i32
    %13 = arith.addi %12, %arg1 : i32
    %c16_i32 = arith.constant 16 : i32
    %14 = arith.muli %13, %c16_i32 : i32
    %15 = tpu.iota {dimensions = array<i32: 0>} : vector<16x4xi32>
    %16 = vector.broadcast %14 : i32 to vector<16x4xi32>
    %17 = arith.addi %16, %15 : vector<16x4xi32>
    %c2_i32 = arith.constant 2 : i32
    %18 = vector.broadcast %c2_i32 : i32 to vector<16x4xi32>
    %19 = arith.cmpi slt, %17, %18 : vector<16x4xi32>
    %cst_7 = arith.constant 0.000000e+00 : f32
    %20 = vector.broadcast %cst_7 : f32 to vector<16x4xf32>
    %21 = arith.select %19, %11, %20 : vector<16x4xi1>, vector<16x4xf32>
    %c0_8 = arith.constant 0 : index
    %c0_9 = arith.constant 0 : index
    %22 = vector.load %arg6[%c0_8, %c0_9] : memref<16x4xf32, #tpu.memory_space<vmem>>, vector<16x4xf32>
    %23 = arith.addf %22, %21 : vector<16x4xf32>
    %c0_10 = arith.constant 0 : index
    %c0_11 = arith.constant 0 : index
    %24 = vector.load %arg6[%c0_10, %c0_11] : memref<16x4xf32, #tpu.memory_space<vmem>>, vector<16x4xf32>
    tpu.vector_store %arg6[%c0_10, %c0_11], %23 {strides = array<i32>} : memref<16x4xf32, #tpu.memory_space<vmem>>, vector<16x4xf32>,
    %c0_i32_12 = arith.constant 0 : i32
    %25 = arith.cmpi eq, %arg1, %c0_i32_12 : i32
    %26 = arith.extui %25 : i1 to i32
    %c0_i32_13 = arith.constant 0 : i32
    %27 = arith.cmpi ne, %26, %c0_i32_13 : i32
    scf.if %27 {
      %c0_14 = arith.constant 0 : index
      %c0_15 = arith.constant 0 : index
      %28 = vector.load %arg6[%c0_14, %c0_15] : memref<16x4xf32, #tpu.memory_space<vmem>>, vector<16x4xf32>
      %29 = vector.shape_cast %28 : vector<16x4xf32> to vector<1x16x4xf32>
      %cst_16 = arith.constant dense<0.000000e+00> : vector<1xf32>
      %30 = vector.multi_reduction <add>, %29, %cst_16 [1, 2] : vector<1x16x4xf32> to vector<1xf32>
      %31 = vector.shape_cast %30 : vector<1xf32> to vector<1x1x1xf32>
      %32 = vector.extract %31[0, 0, 0] : f32 from vector<1x1x1xf32>
      %33 = vector.broadcast %32 : f32 to vector<8x128xf32>
      %c0_17 = arith.constant 0 : index
      %c0_18 = arith.constant 0 : index
      %34 = vector.load %arg5[%c0_17, %c0_18] : memref<8x128xf32, #tpu.memory_space<vmem>>, vector<8x128xf32>
      tpu.vector_store %arg5[%c0_17, %c0_18], %33 {strides = array<i32>} : memref<8x128xf32, #tpu.memory_space<vmem>>, vector<8x128xf32>,
    } else {
    }
    return
  }
  func.func @transform_0(%arg0: i32, %arg1: i32) -> (i32, i32) {
    %c0_i32 = arith.constant 0 : i32
    %c0_i32_0 = arith.constant 0 : i32
    %c0_i32_1 = arith.constant 0 : i32
    return %c0_i32, %c0_i32_0 : i32, i32
  }
  func.func @transform_1(%arg0: i32, %arg1: i32) -> (i32, i32) {
    %c1_i32 = arith.constant 1 : i32
    %0 = arith.muli %arg0, %c1_i32 : i32
    %1 = arith.addi %0, %arg1 : i32
    %c0_i32 = arith.constant 0 : i32
    %c0_i32_0 = arith.constant 0 : i32
    return %1, %c0_i32 : i32, i32
  }
  func.func @transform_2(%arg0: i32, %arg1: i32) -> (i32, i32) {
    %c1_i32 = arith.constant 1 : i32
    %0 = arith.muli %arg0, %c1_i32 : i32
    %1 = arith.addi %0, %arg1 : i32
    %c0_i32 = arith.constant 0 : i32
    %c0_i32_0 = arith.constant 0 : i32
    return %1, %c0_i32 : i32, i32
  }
  func.func @transform_3(%arg0: i32, %arg1: i32) -> (i32, i32) {
    %c0_i32 = arith.constant 0 : i32
    %c0_i32_0 = arith.constant 0 : i32
    return %arg0, %c0_i32 : i32, i32
  }
}

</mosaic_0001>

<llo_original>
// kernel: tpu_custom_call.1
$region0: #{tpu_custom_call.1}
  #allocation0 [shape = 'u32[]', space=smem, size = 0x4, offset = 0x4, fixed_abs, tag = 'smem constant byte address 0x4 - core index']
  #allocation1 [shape = 'u32[144,128]{1,0:T(1,128)}', space=vmem, size = 0x12000, scoped, tag = 'internal scratch']
  #allocation2 [shape = 'f32[16,4]{1,0:T(8,128)}', space=vmem, size = 0x2000, scoped, tag = 'scratch operand']
  %s0 = inlined_call_operand.vmem [shape: f32[128,4], index: 0, kind: input, shape index: {}]
  %s1 = inlined_call_operand.vmem [shape: f32[2,128], index: 1, kind: input, shape index: {}]
  %s2 = inlined_call_operand.vmem [shape: f32[2,128], index: 2, kind: input, shape index: {}]
  %s3 = inlined_call_operand.hbm [shape: f32[8,128], index: 3, kind: output, shape index: {}]
  %s4 = sld [smem:[#allocation0]]
  $region30: #{tpu_custom_call.1} parent=0
    _
  %s6 = ssub.s32 1, %s4
  %s7 = scalar_select 0, %s6, %s4
  $region1: #{tpu_custom_call.1} parent=0
    #allocation3 [shape = 'u8[4096]{0}', space=vmem, size = 0x1000, scoped, tag = 'output window, operand 0, single buffered']
    #allocation4 [shape = 's32[1]{0}', space=sflag, size = 0x4, scoped, tag = 'scoped memory for tpu_custom_call.1']
    %8 = vsyncpa [#allocation4], 0
    // Predicated region
    $region2: #{tpu_custom_call.1} parent=1 // pred_check
      _
    $region3: #{tpu_custom_call.1} parent=1 // pred_check_branch
      %10 = sbr.rel (0) target = $region5
    $region4: #{tpu_custom_call.1} parent=1 // pred_region
      _
    $region5: #{tpu_custom_call.1} parent=1 // pred_fallthru
      _
    // Predicated region
    $region6: #{tpu_custom_call.1} parent=1 // pred_check
      _
    $region7: #{tpu_custom_call.1} parent=1 // pred_check_branch
      %12 = sbr.rel (0) target = $region9
    $region8: #{tpu_custom_call.1} parent=1 // pred_region
      %s13 = sadd.s32 0, 0
      %s14 = smul.u32 8, %s13
      %s15 = ssub.s32 1, %s14
      %s16 = smul.u32 32, %s15
      %p17 = scmp.lt.s32.totalorder %s14, 0
      %s18 = scalar_select %p17, %s14, 0
      %s19 = smul.addr %s18, 2
      %s20 = scalar_lea.vmem %s1, %s19
      %s21 = sadd.s32 0, 0
      %s22 = smul.u32 8, %s21
      %s23 = ssub.s32 1, %s22
      %s24 = smul.u32 32, %s23
    $region9: #{tpu_custom_call.1} parent=1 // pred_fallthru
      _
    // Predicated region
    $region10: #{tpu_custom_call.1} parent=1 // pred_check
      _
    $region11: #{tpu_custom_call.1} parent=1 // pred_check_branch
      %26 = sbr.rel (0) target = $region13
    $region12: #{tpu_custom_call.1} parent=1 // pred_region
      %s27 = sadd.s32 0, 0
      %s28 = smul.u32 8, %s27
      %s29 = ssub.s32 1, %s28
      %s30 = smul.u32 32, %s29
      %p31 = scmp.lt.s32.totalorder %s28, 0
      %s32 = scalar_select %p31, %s28, 0
      %s33 = smul.addr %s32, 2
      %s34 = scalar_lea.vmem %s2, %s33
      %s35 = sadd.s32 0, 0
      %s36 = smul.u32 8, %s35
      %s37 = ssub.s32 1, %s36
      %s38 = smul.u32 32, %s37
    $region13: #{tpu_custom_call.1} parent=1 // pred_fallthru
      _
    %s39 = sadd.s32 0, 0
    %s40 = smul.u32 8, %s39
    %s41 = ssub.s32 1, %s40
    %s42 = smul.u32 32, %s41
    %p43 = scmp.lt.s32.totalorder %s40, 0
    %s44 = scalar_select %p43, %s40, 0
    %s45 = smul.addr %s44, 2
    %s46 = scalar_lea.vmem %s1, %s45
    %s47 = sadd.s32 0, 0
    %s48 = smul.u32 8, %s47
    %s49 = ssub.s32 1, %s48
    %s50 = smul.u32 32, %s49
    %p51 = scmp.lt.s32.totalorder %s48, 0
    %s52 = scalar_select %p51, %s48, 0
    %s53 = smul.addr %s52, 2
    %s54 = scalar_lea.vmem %s2, %s53
    %s55 = sadd.s32 0, 0
    %s56 = smul.u32 8, %s55
    %s57 = ssub.s32 1, %s56
    %s58 = smul.u32 32, %s57
    %p59 = scmp.lt.s32.totalorder %s56, 0
    %s60 = scalar_select %p59, %s56, 0
    %s61 = smul.addr %s60, 2
    %s62 = scalar_lea.vmem %s1, %s61
    %s63 = sadd.s32 0, 0
    %s64 = smul.u32 8, %s63
    %s65 = ssub.s32 1, %s64
    %s66 = smul.u32 32, %s65
    %s67 = sadd.s32 0, 0
    %s68 = smul.u32 8, %s67
    %s69 = ssub.s32 1, %s68
    %s70 = smul.u32 32, %s69
    %p71 = scmp.lt.s32.totalorder %s68, 0
    %s72 = scalar_select %p71, %s68, 0
    %s73 = smul.addr %s72, 2
    %s74 = scalar_lea.vmem %s2, %s73
    %s75 = sadd.s32 0, 0
    %s76 = smul.u32 8, %s75
    %s77 = ssub.s32 1, %s76
    %s78 = smul.u32 32, %s77
    %p79 = scmp.eq.s32.totalorder 0, 0
    // Predicated region
    $region14: #{tpu_custom_call.1} parent=1 // pred_check
      %p80 = pneg %p79
    $region15: #{tpu_custom_call.1} parent=1 // pred_check_branch
      %82 = sbr.rel (%p80) target = $region17
    $region16: #{tpu_custom_call.1} parent=1 // pred_region
      %vm83 = vcmask 31744
      %84 = vst.msk [vmem:[#allocation2] sm:$0xff] %vm83, 0.0
      %85 = vst.msk [vmem:[#allocation2 + $0x8] sm:$0xff] %vm83, 0.0
    $region17: #{tpu_custom_call.1} parent=1 // pred_fallthru
      _
    %v86 = vld [vmem:[%s62] sm:$0xff]
    %v87 = vld [vmem:[%s62 + $0x8] sm:$0xff]
    %v88 = vld [vmem:[%s74] sm:$0xff]
    %v89 = vld [vmem:[%s74 + $0x8] sm:$0xff]
    %v90 = vsub.f32 %v86, %v88
    %v91 = vsub.f32 %v87, %v89
    %v92 = vadd.f32 %v90, 1e-06
    %v93 = vadd.f32 %v91, 1e-06
    %v94 = vmul.f32 %v92, %v92
    %v95 = vmul.f32 %v93, %v93
    %v96 = vld [vmem:[%s0] sm:$0xff]
    %v97 = vld [vmem:[%s0 + $0x8] sm:$0xff]
    %v98 = vld [vmem:[%s0 + $0x10] sm:$0xff]
    %v99 = vld [vmem:[%s0 + $0x18] sm:$0xff]
    %v100 = vld [vmem:[%s0 + $0x20] sm:$0xff]
    %v101 = vld [vmem:[%s0 + $0x28] sm:$0xff]
    %v102 = vld [vmem:[%s0 + $0x30] sm:$0xff]
    %v103 = vld [vmem:[%s0 + $0x38] sm:$0xff]
    %v104 = vld [vmem:[%s0 + $0x40] sm:$0xff]
    %v105 = vld [vmem:[%s0 + $0x48] sm:$0xff]
    %v106 = vld [vmem:[%s0 + $0x50] sm:$0xff]
    %v107 = vld [vmem:[%s0 + $0x58] sm:$0xff]
    %v108 = vld [vmem:[%s0 + $0x60] sm:$0xff]
    %v109 = vld [vmem:[%s0 + $0x68] sm:$0xff]
    %v110 = vld [vmem:[%s0 + $0x70] sm:$0xff]
    %v111 = vld [vmem:[%s0 + $0x78] sm:$0xff]
    %112 = vmatprep.subr.mxu0 0.0
    %113 = vmatpush1.msra.mxu0 %v111
    %114 = vmatprep.subr.mxu0 0.0
    %115 = vmatpush1.msra.mxu0 %v110
    %116 = vmatprep.subr.mxu0 0.0
    %117 = vmatpush1.msra.mxu0 %v109
    %118 = vmatprep.subr.mxu0 0.0
    %119 = vmatpush1.msra.mxu0 %v108
    %120 = vmatprep.subr.mxu0 0.0
    %121 = vmatpush1.msra.mxu0 %v107
    %122 = vmatprep.subr.mxu0 0.0
    %123 = vmatpush1.msra.mxu0 %v106
    %124 = vmatprep.subr.mxu0 0.0
    %125 = vmatpush1.msra.mxu0 %v105
    %126 = vmatprep.subr.mxu0 0.0
    %127 = vmatpush1.msra.mxu0 %v104
    %128 = vmatprep.subr.mxu0 0.0
    %129 = vmatpush1.msra.mxu0 %v103
    %130 = vmatprep.subr.mxu0 0.0
    %131 = vmatpush1.msra.mxu0 %v102
    %132 = vmatprep.subr.mxu0 0.0
    %133 = vmatpush1.msra.mxu0 %v101
    %134 = vmatprep.subr.mxu0 0.0
    %135 = vmatpush1.msra.mxu0 %v100
    %136 = vmatprep.subr.mxu0 0.0
    %137 = vmatpush1.msra.mxu0 %v99
    %138 = vmatprep.subr.mxu0 0.0
    %139 = vmatpush1.msra.mxu0 %v98
    %140 = vmatprep.subr.mxu0 0.0
    %141 = vmatpush1.msra.mxu0 %v97
    %142 = vmatprep.subr.mxu0 0.0
    %143 = vmatpush1.msra.mxu0 %v96
    %144 = vmatprep.subr.mxu0 0.0
    %145 = vmatpush2.msra.mxu0 0.0
    %146 = vmatprep.subr.mxu0 0.0
    %147 = vmatpush2.msra.mxu0 0.0
    %148 = vmatprep.subr.mxu0 0.0
    %149 = vmatpush2.msra.mxu0 0.0
    %150 = vmatprep.subr.mxu0 0.0
    %151 = vmatpush2.msra.mxu0 0.0
    %152 = vmatprep.subr.mxu0 0.0
    %153 = vmatpush2.msra.mxu0 0.0
    %154 = vmatprep.subr.mxu0 0.0
    %155 = vmatpush2.msra.mxu0 0.0
    %156 = vmatprep.subr.mxu0 0.0
    %157 = vmatpush2.msra.mxu0 0.0
    %158 = vmatprep.subr.mxu0 0.0
    %159 = vmatpush2.msra.mxu0 0.0
    %160 = vmatprep.subr.mxu0 0.0
    %161 = vmatpush2.msra.mxu0 0.0
    %162 = vmatprep.subr.mxu0 0.0
    %163 = vmatpush2.msra.mxu0 0.0
    %164 = vmatprep.subr.mxu0 0.0
    %165 = vmatpush2.msra.mxu0 0.0
    %166 = vmatprep.subr.mxu0 0.0
    %167 = vmatpush2.msra.mxu0 0.0
    %168 = vmatprep.subr.mxu0 0.0
    %169 = vmatpush2.msra.mxu0 0.0
    %170 = vmatprep.subr.mxu0 0.0
    %171 = vmatpush2.msra.mxu0 0.0
    %172 = vmatprep.subr.mxu0 0.0
    %173 = vmatpush2.msra.mxu0 0.0
    %174 = vmatprep.subr.mxu0 0.0
    %175 = vmatpush2.msra.mxu0 0.0
    %176 = vmatprep.mubr.f32.mxu0 0.0
    %177 = vmatmul.mubr.f32.gmra.mxu0 %v94
    %v178 = vpop.f32.mrf.mxu0
    %v179 = vadd.f32 0.0, %v178
    %v180 = vpop.f32.mrf.mxu0
    %181 = vmatprep.mubr.f32.mxu0 0.0
    %182 = vmatmul.mubr.f32.gmra.mxu0 %v95
    %v183 = vpop.f32.mrf.mxu0
    %v184 = vadd.f32 0.0, %v183
    %v185 = vpop.f32.mrf.mxu0
    %186 = vdwg.mxu0
    %v187 = vrsqrt.pop %v179
    %v188 = vmul.f32 %v179, %v187
    %vm189 = vcmp.eq.f32.partialorder %v179, inf
    %v190 = vsel %vm189, %v179, %v188
    %vm191 = vcmp.eq.f32.partialorder %v179, 0.0
    %v192 = vand.u32 %v179, 2147483648
    %v193 = vsel %vm191, %v192, %v190
    %v194 = vrsqrt.pop %v184
    %v195 = vmul.f32 %v184, %v194
    %vm196 = vcmp.eq.f32.partialorder %v184, inf
    %v197 = vsel %vm196, %v184, %v195
    %vm198 = vcmp.eq.f32.partialorder %v184, 0.0
    %v199 = vand.u32 %v184, 2147483648
    %v200 = vsel %vm198, %v199, %v197
    %s201 = sadd.s32 0, 0
    %s202 = smul.u32 %s201, 16
    %v203 = vlaneseq
    %v204 = vshrl.u32 %v203, 7
    %v205 = vadd.s32 %v204, 8
    %v206 = vstv %s202
    %v207 = vadd.s32 %v206, %v204
    %v208 = vadd.s32 %v206, %v205
    %vm209 = vcmp.lt.s32.totalorder %v207, 2
    %vm210 = vcmp.lt.s32.totalorder %v208, 2
    %v211 = vsel %vm209, %v193, 0.0
    %v212 = vsel %vm210, %v200, 0.0
    %v213 = vld [vmem:[#allocation2] sm:$0xff]
    %v214 = vld [vmem:[#allocation2 + $0x8] sm:$0xff]
    %v215 = vadd.f32 %v213, %v211
    %v216 = vadd.f32 %v214, %v212
    %vm217 = vcmask 31744
    %218 = vst.msk [vmem:[#allocation2] sm:$0xff] %vm217, %v215
    %219 = vst.msk [vmem:[#allocation2 + $0x8] sm:$0xff] %vm217, %v216
    // Predicated region
    $region18: #{tpu_custom_call.1} parent=1 // pred_check
      %p220 = pneg %p79
    $region19: #{tpu_custom_call.1} parent=1 // pred_check_branch
      %222 = sbr.rel (%p220) target = $region21
    $region20: #{tpu_custom_call.1} parent=1 // pred_region
      %v223 = vld [vmem:[#allocation2] sm:$0xff]
      %v224 = vld [vmem:[#allocation2 + $0x8] sm:$0xff]
      %v225 = vsel %vm217, %v223, 0.0
      %v226 = vsel %vm217, %v224, 0.0
      %v227 = vadd.f32 %v225, %v226
      %228 = vadd.xlane.f32.xlu0 %v227
      %v229 = vpop.xlane.xlu0 %228
      %v230 = vrot.slane %v229, 4
      %v231 = vadd.f32 %v229, %v230
      %v232 = vrot.slane %v231, 2
      %v233 = vadd.f32 %v231, %v232
      %v234 = vrot.slane %v233, 1
      %v235 = vadd.f32 %v233, %v234
      %s236 = vtos %v235
      %v237 = vstv %s236
      %238 = vst [vmem:[#allocation3] sm:$0xff] %v237
    $region21: #{tpu_custom_call.1} parent=1 // pred_fallthru
      _
    // Predicated region
    $region22: #{tpu_custom_call.1} parent=1 // pred_check
      _
    $region23: #{tpu_custom_call.1} parent=1 // pred_check_branch
      %240 = sbr.rel (0) target = $region25
    $region24: #{tpu_custom_call.1} parent=1 // pred_region
      %s242 = ssub.s32 128, 128
      %243 = vsyncadd [#allocation4], %s242
      %s245 = sshll.u32 [#allocation3], 4
      %s246 = int_to_ptr.vmem [resolvable:$true] %s245
      %248 = dma.vmem_to_hbm [thread:$0]  %s246, 128, %s3, [#allocation4]
    $region25: #{tpu_custom_call.1} parent=1 // pred_fallthru
      _
    // Predicated region
    $region26: #{tpu_custom_call.1} parent=1 // pred_check
      _
    $region27: #{tpu_custom_call.1} parent=1 // pred_check_branch
      %250 = sbr.rel (0) target = $region29
    $region28: #{tpu_custom_call.1} parent=1 // pred_region
      %251 = dma.done [#allocation4], 128
    $region29: #{tpu_custom_call.1} parent=1 // pred_fallthru
      _
    %252 = vsyncpa [#allocation4], 1

</llo_original>
